<compile_context>
chip_gen: v5e
topology: v5e:2x2
jax: 0.10.0
libtpu: 0.0.40
codegen_flags: <defaults>
</compile_context>

<pallas_src>
import functools

import jax
import jax.numpy as jnp
from jax.experimental import pallas as pl
from jax.experimental.pallas import tpu as pltpu

_MIN_VMEM_LIMIT = 16 * 1024 * 1024
_HEADROOM = 4 * 1024 * 1024


def _physical_vmem_bytes():
    """Per-TensorCore VMEM capacity; conservative fallback if query fails."""
    try:
        info = pltpu.get_tpu_info()
        v = int(getattr(info, "vmem_capacity_bytes", 0))
        if v > 0:
            return v
    except Exception:
        pass
    return 64 * 1024 * 1024  # v7x per-TC physical VMEM (smallest across gens)


def _block_byte_budget(vmem_bytes):
    # Per double-buffered input block: ~1/6 of VMEM, capped at 24 MiB.
    # v5e/v6e (128 MiB) -> ~21 MiB blocks, v7x (64 MiB) -> ~10.7 MiB blocks.
    return max(4 * 1024 * 1024, min(24 * 1024 * 1024, vmem_bytes // 6))


def _choose_block_rows(nc, hw, itemsize, budget, align):
    rows = budget // max(1, hw * itemsize)
    rows = max(align, (rows // align) * align)
    if rows < nc:
        return rows
    # Whole row axis fits in one block: split in two (if possible) so v7x can
    # shard the parallel axis across both TensorCores and so the next block's
    # DMA overlaps the current block's compute.
    half = (((nc + 1) // 2) + align - 1) // align * align
    return half if half < nc else nc


def _avgmax_kernel(x_ref, o_ref, *, half_inv_hw):
    # x_ref: (br, HW) tile; reduce along the fast lane (last) axis.
    x = x_ref[...]
    s = jnp.sum(x.astype(jnp.float32), axis=-1)      # f32 accumulation for the sum
    m = jnp.max(x, axis=-1).astype(jnp.float32)      # max is exact in input dtype
    res = s * half_inv_hw + 0.5 * m                  # (br,)
    # Lane-dense output row: (1, 1, br).
    o_ref[...] = res[None, None, :].astype(o_ref.dtype)


def _avgmax_kernel_hw_tiled(x_ref, o_ref, sum_ref, max_ref, *,
                            half_inv_hw, hw, hw_tile):
    # Huge-H*W path: reduction axis tiled over grid axis 1 (P3 accumulator).
    k = pl.program_id(1)

    @pl.when(k == 0)
    def _():
        sum_ref[...] = jnp.zeros_like(sum_ref)
        max_ref[...] = jnp.full_like(max_ref, -jnp.inf)

    x = x_ref[...]
    xs = x.astype(jnp.float32)
    xm = xs
    if hw % hw_tile != 0:  # trace-time: only mask when the lane tail is padded
        lane = jax.lax.broadcasted_iota(jnp.int32, x.shape, 1)
        valid = (k * hw_tile + lane) < hw
        xs = jnp.where(valid, xs, 0.0)
        xm = jnp.where(valid, xm, -jnp.inf)

    sum_ref[...] += jnp.sum(xs, axis=-1, keepdims=True)
    max_ref[...] = jnp.maximum(max_ref[...], jnp.max(xm, axis=-1, keepdims=True))

    @pl.when(k == pl.num_programs(1) - 1)
    def _():
        res = sum_ref[...] * half_inv_hw + 0.5 * max_ref[...]   # (br, 1)
        o_ref[...] = jnp.transpose(res, (1, 0))[None].astype(o_ref.dtype)


def global_avg_max_pool2d(x):
    # NCHW (PyTorch layout) -> (N, C, 1, 1).
    N, C, H, W = x.shape
    NC, HW = N * C, H * W
    xf = x.reshape(NC, HW)
    itemsize = xf.dtype.itemsize
    align = {4: 8, 2: 16, 1: 32}.get(itemsize, 8)

    vmem_bytes = _physical_vmem_bytes()
    budget = _block_byte_budget(vmem_bytes)
    half_inv_hw = 0.5 / HW

    if align * HW * itemsize <= budget:
        # --- streaming path: full H*W row per block, tile only the N*C axis ---
        br = _choose_block_rows(NC, HW, itemsize, budget, align)
        nblk = pl.cdiv(NC, br)
        block_bytes = br * HW * itemsize
        vmem_limit = int(min(vmem_bytes,
                             max(_MIN_VMEM_LIMIT, 2 * block_bytes + _HEADROOM)))
        out = pl.pallas_call(
            functools.partial(_avgmax_kernel, half_inv_hw=half_inv_hw),
            out_shape=jax.ShapeDtypeStruct((nblk, 1, br), x.dtype),
            grid=(nblk,),
            in_specs=[pl.BlockSpec((br, HW), lambda i: (i, 0))],
            out_specs=pl.BlockSpec((1, 1, br), lambda i: (i, 0, 0)),
            compiler_params=pltpu.CompilerParams(
                dimension_semantics=("parallel",),
                vmem_limit_bytes=vmem_limit,
            ),
        )(xf)
    else:
        # --- huge-H*W path: tile the reduction (lane) axis as "arbitrary" ---
        br = min(align, NC)
        hw_tile = max(128, (budget // max(1, br * itemsize)) // 128 * 128)
        hw_tile = min(hw_tile, pl.cdiv(HW, 128) * 128)
        nblk = pl.cdiv(NC, br)
        nk = pl.cdiv(HW, hw_tile)
        block_bytes = br * hw_tile * itemsize
        vmem_limit = int(min(vmem_bytes,
                             max(_MIN_VMEM_LIMIT, 2 * block_bytes + _HEADROOM)))
        out = pl.pallas_call(
            functools.partial(_avgmax_kernel_hw_tiled, half_inv_hw=half_inv_hw,
                              hw=HW, hw_tile=hw_tile),
            out_shape=jax.ShapeDtypeStruct((nblk, 1, br), x.dtype),
            grid=(nblk, nk),
            in_specs=[pl.BlockSpec((br, hw_tile), lambda i, k: (i, k))],
            out_specs=pl.BlockSpec((1, 1, br), lambda i, k: (i, 0, 0)),
            scratch_shapes=[pltpu.VMEM((br, 1), jnp.float32),
                            pltpu.VMEM((br, 1), jnp.float32)],
            compiler_params=pltpu.CompilerParams(
                dimension_semantics=("parallel", "arbitrary"),
                vmem_limit_bytes=vmem_limit,
            ),
        )(xf)

    # Lane-dense (nblk, 1, br) result -> flatten, drop row-padding, reshape.
    return out.reshape(-1)[:NC].reshape(N, C, 1, 1)


def _reference(x):
    return 0.5 * (jnp.mean(x, axis=(2, 3), keepdims=True)
                  + jnp.max(x, axis=(2, 3), keepdims=True))


if __name__ == "__main__":
    key = jax.random.PRNGKey(0)

    # Primary small example (matches the module's intended use).
    x = jax.random.normal(key, (2, 4, 16, 16), dtype=jnp.float32)
    y = jax.block_until_ready(global_avg_max_pool2d(x))
    assert y.shape == (2, 4, 1, 1)
    assert jnp.allclose(y, _reference(x), atol=1e-5, rtol=1e-5)

    # Second small check that exercises a multi-block (grid > 1) row axis.
    x2 = jax.random.normal(jax.random.PRNGKey(1), (8, 32, 16, 16),
                           dtype=jnp.float32)
    y2 = jax.block_until_ready(global_avg_max_pool2d(x2))
    assert y2.shape == (8, 32, 1, 1)
    assert jnp.allclose(y2, _reference(x2), atol=1e-5, rtol=1e-5)

    print("KERNEL_OK")
</pallas_src>

<mosaic_0001>
module attributes {stable_mosaic.version = 11 : i64} {
  func.func @_avgmax_kernel(%arg0: i32, %arg1: memref<8x256xf32, #tpu.memory_space<vmem>>, %arg2: memref<1x1x8xf32, #tpu.memory_space<vmem>>) attributes {dimension_semantics = [#tpu.dimension_semantics<parallel>], iteration_bounds = array<i64: 1>, scalar_prefetch = 0 : i64, scratch_operands = 0 : i64, tpu.core_type = #tpu.core_type<tc>, window_params = [{transform_indices = @transform_0, window_bounds = array<i64: 8, 256>}, {transform_indices = @transform_1, window_bounds = array<i64: 1, 1, 8>}]} {
    %c0 = arith.constant 0 : index
    %c0_0 = arith.constant 0 : index
    %0 = vector.load %arg1[%c0, %c0_0] : memref<8x256xf32, #tpu.memory_space<vmem>>, vector<8x256xf32>
    %cst = arith.constant dense<0.000000e+00> : vector<8xf32>
    %1 = vector.multi_reduction <add>, %0, %cst [1] : vector<8x256xf32> to vector<8xf32>
    %cst_1 = arith.constant dense<0xFF800000> : vector<8xf32>
    %2 = vector.multi_reduction <maximumf>, %0, %cst_1 [1] : vector<8x256xf32> to vector<8xf32>
    %cst_2 = arith.constant 0.001953125 : f32
    %3 = vector.broadcast %cst_2 : f32 to vector<8xf32>
    %4 = arith.mulf %1, %3 : vector<8xf32>
    %cst_3 = arith.constant 5.000000e-01 : f32
    %5 = vector.broadcast %cst_3 : f32 to vector<8xf32>
    %6 = arith.mulf %5, %2 : vector<8xf32>
    %7 = arith.addf %4, %6 : vector<8xf32>
    %8 = vector.shape_cast %7 : vector<8xf32> to vector<1x1x8xf32>
    %c0_4 = arith.constant 0 : index
    %c0_5 = arith.constant 0 : index
    %c0_6 = arith.constant 0 : index
    %9 = vector.load %arg2[%c0_4, %c0_5, %c0_6] : memref<1x1x8xf32, #tpu.memory_space<vmem>>, vector<1x1x8xf32>
    tpu.vector_store %arg2[%c0_4, %c0_5, %c0_6], %8 {strides = array<i32>} : memref<1x1x8xf32, #tpu.memory_space<vmem>>, vector<1x1x8xf32>,
    return
  }
  func.func @transform_0(%arg0: i32) -> (i32, i32) {
    %c0_i32 = arith.constant 0 : i32
    %c0_i32_0 = arith.constant 0 : i32
    return %arg0, %c0_i32 : i32, i32
  }
  func.func @transform_1(%arg0: i32) -> (i32, i32, i32) {
    %c0_i32 = arith.constant 0 : i32
    %c0_i32_0 = arith.constant 0 : i32
    %c0_i32_1 = arith.constant 0 : i32
    return %arg0, %c0_i32, %c0_i32_0 : i32, i32, i32
  }
}

</mosaic_0001>

<llo_original>
// kernel: tpu_custom_call.1
$region0: #{tpu_custom_call.1}
  #allocation0 [shape = 'u32[]', space=smem, size = 0x4, offset = 0x4, fixed_abs, tag = 'smem constant byte address 0x4 - core index']
  #allocation1 [shape = 'u32[72,128]{1,0:T(1,128)}', space=vmem, size = 0x9000, scoped, tag = 'internal scratch']
  %s0 = inlined_call_operand.hbm [shape: f32[8,256], index: 0, kind: input, shape index: {}]
  %s1 = inlined_call_operand.hbm [shape: f32[1,1,8], index: 1, kind: output, shape index: {}]
  %s2 = sld [smem:[#allocation0]]
  $region18: #{tpu_custom_call.1} parent=0
    _
  %s4 = ssub.s32 1, %s2
  %s5 = scalar_select 0, %s4, %s2
  $region1: #{tpu_custom_call.1} parent=0
    #allocation2 [shape = 'u8[8192]{0}', space=vmem, size = 0x2000, scoped, tag = 'input window, operand 0, single buffered']
    #allocation3 [shape = 's32[1]{0}', space=sflag, size = 0x4, scoped, tag = 'scoped memory for tpu_custom_call.1']
    #allocation4 [shape = 's32[1]{0}', space=sflag, size = 0x4, scoped, tag = 'scoped memory for tpu_custom_call.1']
    #allocation5 [shape = 'u8[512]{0}', space=vmem, size = 0x400, scoped, tag = 'output window, operand 0, single buffered']
    %6 = vsyncpa [#allocation3], 0
    %7 = vsyncpa [#allocation4], 0
    // Predicated region
    $region2: #{tpu_custom_call.1} parent=1 // pred_check
      _
    $region3: #{tpu_custom_call.1} parent=1 // pred_check_branch
      %9 = sbr.rel (0) target = $region5
    $region4: #{tpu_custom_call.1} parent=1 // pred_region
      %11 = vsyncadd [#allocation3], 0
      %s13 = sshll.u32 %s0, 4
      %s14 = int_to_ptr.hbm [resolvable:$true] %s13
      %s15 = sshll.u32 [#allocation2], 4
      %s16 = int_to_ptr.vmem [resolvable:$true] %s15
      %18 = dma.hbm_to_vmem [thread:$0]  %s14, 256, %s16, [#allocation3]
    $region5: #{tpu_custom_call.1} parent=1 // pred_fallthru
      _
    // Predicated region
    $region6: #{tpu_custom_call.1} parent=1 // pred_check
      _
    $region7: #{tpu_custom_call.1} parent=1 // pred_check_branch
      %20 = sbr.rel (0) target = $region9
    $region8: #{tpu_custom_call.1} parent=1 // pred_region
      %22 = dma.done [#allocation3], 256
    $region9: #{tpu_custom_call.1} parent=1 // pred_fallthru
      _
    %v23 = vld [vmem:[#allocation2] sm:$0xff]
    %v24 = vld [vmem:[#allocation2 + $0x8] sm:$0xff]
    %v25 = vadd.f32 %v23, %v24
    %26 = vadd.xlane.f32.xlu0 %v25
    %v27 = vpop.xlane.xlu0 %26
    %v28 = vmax.f32 %v23, %v24
    %29 = vmax.xlane.f32.xlu0 %v28
    %v30 = vpop.xlane.xlu0 %29
    %v31 = vmul.f32 %v27, 0.001953125
    %v32 = vmul.f32 %v30, 0.5
    %v33 = vadd.f32 %v31, %v32
    %v35 = vlaneseq
    %v36 = vand.u32 %v35, 127
    %v37 = vperm.slane %v33, %v36
    %vm39 = vcmask 57344
    %40 = vst.msk [vmem:[#allocation5] sm:$0x1] %vm39, %v37
    // Predicated region
    $region10: #{tpu_custom_call.1} parent=1 // pred_check
      _
    $region11: #{tpu_custom_call.1} parent=1 // pred_check_branch
      %42 = sbr.rel (0) target = $region13
    $region12: #{tpu_custom_call.1} parent=1 // pred_region
      %44 = vsyncadd [#allocation4], 0
      %s46 = sshll.u32 [#allocation5], 4
      %s47 = int_to_ptr.vmem [resolvable:$true] %s46
      %s48 = sshll.u32 %s1, 4
      %s49 = int_to_ptr.hbm [resolvable:$true] %s48
      %51 = dma.vmem_to_hbm [thread:$0]  %s47, 16, %s49, [#allocation4]
    $region13: #{tpu_custom_call.1} parent=1 // pred_fallthru
      _
    // Predicated region
    $region14: #{tpu_custom_call.1} parent=1 // pred_check
      _
    $region15: #{tpu_custom_call.1} parent=1 // pred_check_branch
      %53 = sbr.rel (0) target = $region17
    $region16: #{tpu_custom_call.1} parent=1 // pred_region
      %55 = dma.done [#allocation4], 16
    $region17: #{tpu_custom_call.1} parent=1 // pred_fallthru
      _
    %56 = vsyncpa [#allocation3], 1
    %57 = vsyncpa [#allocation4], 1

</llo_original>
